<compile_context>
chip_gen: v6e
topology: v6e:2x2x1
jax: 0.10.0
libtpu: 0.0.40
codegen_flags: <defaults>
</compile_context>

<pallas_src>
import jax
import jax.numpy as jnp
from jax.experimental import pallas as pl
from jax.experimental.pallas import tpu as pltpu

# ---- model hyper-parameters (small, consistent with the module) -------------
B = 2            # number of molecules (graphs) in the batch
N = 8            # atoms per molecule == f32 sublane tile (enables seg-free pooling)
F = 32           # rep_model.n_atom_basis
H = 16           # MLP n_hidden
H2 = 2 * H
MEAN_E = 0.5     # mean_e
STD_E = 2.0      # std_e
TOTAL_CHARGE = -1.0
LN2 = 0.6931471805599453

BN = B * N

# weight-slab row offsets (rows padded to a multiple of 8)
_ROW_WZ = 0            # rows 0:8    Wz_aug  [8, 2H]  (row 6 = fused bias, row 7 = 0)
_ROW_WBACK = 8         # rows 8:24   Wback   [H, 3]   (lanes 3:2H zero-padded)
_ROW_W2 = 24           # row  24     [w2e*std_e | w2q] [1, 2H]
_ROW_BIAS = 25         # row  25     bias_e scalar in lane 0
_SLAB_ROWS = 32


def _ssp(x):
    # shifted softplus activation (schnetpack-style MLP) -- reference only
    return jax.nn.softplus(x) - LN2


# -----------------------------------------------------------------------------
# Pallas kernel: single invocation, all B*N atoms at once, everything resident.
# -----------------------------------------------------------------------------
def mlmm_kernel(xe_ref, slab_ref, out_ref):
    xe = xe_ref[...]                                          # [BN, 8]

    # --- fused featurizer + first layer of both heads (bias via lane 6) ------
    wz = slab_ref[0:8, :]                                     # [8, 2H]
    z = jnp.dot(xe, wz, preferred_element_type=jnp.float32)   # [BN, 2H]

    # stable shifted softplus: ssp(z) = max(z,0) + log(1 + exp(-|z|)) - ln2
    a1 = jnp.maximum(z, 0.0) + jnp.log(1.0 + jnp.exp(-jnp.abs(z))) - LN2

    # --- second layers: one VPU multiply + partial lane reductions -----------
    w2both = slab_ref[_ROW_W2:_ROW_W2 + 1, :]                 # [1, 2H]
    prod = a1 * w2both                                        # [BN, 2H]
    e_atom = jnp.sum(prod[:, :H], axis=-1, keepdims=True)     # [BN, 1]  (x STD_E)
    q_atom = jnp.sum(prod[:, H:], axis=-1, keepdims=True)     # [BN, 1]
    eq = jnp.concatenate([e_atom, q_atom], axis=-1)           # [BN, 2]

    bias_e = slab_ref[_ROW_BIAS:_ROW_BIAS + 1, 0:1]           # [1, 1]

    # --- per-molecule pooling: static, sublane-aligned 8-row slices ----------
    e_cols = []
    q_parts = []
    for b in range(B):
        r0 = b * N
        s = jnp.sum(eq[r0:r0 + N, :], axis=0, keepdims=True)  # [1, 2] (E_sum, Q_sum)
        e_cols.append(s[:, 0:1] + bias_e)
        corr = (TOTAL_CHARGE - s[:, 1:2]) * jnp.float32(1.0 / N)
        q_parts.append(q_atom[r0:r0 + N, :] + corr)
    e_mol = jnp.concatenate(e_cols, axis=-1)                  # [1, B]
    q_corr = jnp.concatenate(q_parts, axis=0)                 # [BN, 1]

    # --- analytic force: dE/dxyz = (sigmoid(z_e) * w2e*std_e) @ (w1e^T wrx^T)
    sig_e = jax.nn.sigmoid(z[:, :H])                          # [BN, H]
    dz_e = sig_e * w2both[:, :H]                              # [BN, H]  (x STD_E)
    wback = slab_ref[_ROW_WBACK:_ROW_WBACK + H, 0:3]          # [H, 3]
    f = -jnp.dot(dz_e, wback, preferred_element_type=jnp.float32)   # [BN, 3]

    # --- packed output: lane 0 charge, lanes 1:4 force, row 0 lanes 4:4+B energy
    out_ref[:, 0:4] = jnp.concatenate([q_corr, f], axis=-1)
    out_ref[0:1, 4:4 + B] = e_mol


@jax.jit
def model_mlmm_forward(xyz, extfield, params):
    (wrx, wre, brep, w1e, b1e, w2e, b2e, w1q, b1q, w2q, b2q) = params

    # ---- one-time, weight-only folding (XLA side, tiny) ---------------------
    w1 = jnp.concatenate([w1e, w1q], axis=1)                  # [F, 2H]
    b1 = jnp.concatenate([b1e, b1q], axis=1)                  # [1, 2H]
    wz_aug = jnp.concatenate(
        [wrx @ w1,                                            # rows 0:3 (xyz)
         wre @ w1,                                            # rows 3:6 (extfield)
         brep @ w1 + b1,                                      # row 6 (bias, lane==1)
         jnp.zeros((1, H2), jnp.float32)], axis=0)            # row 7 (pad)

    wback = jnp.pad(w1e.T @ wrx.T, ((0, 0), (0, H2 - 3)))     # [H, 2H]
    w2both = jnp.concatenate([w2e.T * STD_E, w2q.T], axis=1)  # [1, 2H] (b2q cancels)
    bias_e = jnp.float32(N) * b2e * STD_E + MEAN_E            # [1, 1]
    bias_row = jnp.pad(bias_e, ((0, 0), (0, H2 - 1)))         # [1, 2H]

    slab = jnp.concatenate(
        [wz_aug, wback, w2both, bias_row,
         jnp.zeros((_SLAB_ROWS - (8 + H + 2), H2), jnp.float32)], axis=0)  # [32, 2H]

    # atom features: [xyz | extfield | 1 | 0]  (homogeneous coord -> bias in matmul)
    xe = jnp.concatenate(
        [xyz.reshape(BN, 3), extfield.reshape(BN, 3),
         jnp.ones((BN, 1), jnp.float32), jnp.zeros((BN, 1), jnp.float32)],
        axis=-1)                                              # [BN, 8]

    out = pl.pallas_call(
        mlmm_kernel,
        out_shape=jax.ShapeDtypeStruct((BN, 8), jnp.float32),
        in_specs=[pl.BlockSpec(memory_space=pltpu.MemorySpace.VMEM),
                  pl.BlockSpec(memory_space=pltpu.MemorySpace.VMEM)],
        out_specs=pl.BlockSpec(memory_space=pltpu.MemorySpace.VMEM),
    )(xe, slab)

    return {
        "qm_energy": out[0, 4:4 + B].reshape(B, 1),
        "qm_force": out[:, 1:4].reshape(B, N, 3),
        "qm_charge": out[:, 0].reshape(B, N),
    }


# ---------------------------- pure-JAX reference -----------------------------
def ref_forward(xyz, extfield, params):
    (wrx, wre, brep, w1e, b1e, w2e, b2e, w1q, b1q, w2q, b2q) = params

    def mol_energy(xyz_m, ext_m):
        feat = xyz_m @ wrx + ext_m @ wre + brep
        e_atom = _ssp(feat @ w1e + b1e) @ w2e + b2e
        return jnp.sum(e_atom)

    def mol_charge(xyz_m, ext_m):
        feat = xyz_m @ wrx + ext_m @ wre + brep
        q = _ssp(feat @ w1q + b1q) @ w2q + b2q
        q = q[:, 0]
        return q + (TOTAL_CHARGE - q.sum()) / q.shape[0]

    energy = jax.vmap(mol_energy)(xyz, extfield)
    grad_xyz = jax.vmap(jax.grad(mol_energy))(xyz, extfield)
    return {
        "qm_energy": (energy * STD_E + MEAN_E).reshape(B, 1),
        "qm_force": -grad_xyz * STD_E,
        "qm_charge": jax.vmap(mol_charge)(xyz, extfield),
    }


def init_params(key):
    ks = jax.random.split(key, 8)
    wrx = 0.3 * jax.random.normal(ks[0], (3, F), jnp.float32)
    wre = 0.3 * jax.random.normal(ks[1], (3, F), jnp.float32)
    brep = 0.1 * jax.random.normal(ks[2], (1, F), jnp.float32)
    w1e = 0.2 * jax.random.normal(ks[3], (F, H), jnp.float32)
    b1e = jnp.zeros((1, H), jnp.float32)
    w2e = 0.2 * jax.random.normal(ks[4], (H, 1), jnp.float32)
    b2e = jnp.zeros((1, 1), jnp.float32)
    w1q = 0.2 * jax.random.normal(ks[5], (F, H), jnp.float32)
    b1q = jnp.zeros((1, H), jnp.float32)
    w2q = 0.2 * jax.random.normal(ks[6], (H, 1), jnp.float32)
    b2q = jnp.zeros((1, 1), jnp.float32)
    return (wrx, wre, brep, w1e, b1e, w2e, b2e, w1q, b1q, w2q, b2q)


if __name__ == "__main__":
    key = jax.random.PRNGKey(0)
    k_xyz, k_ext, k_par = jax.random.split(key, 3)
    xyz = jax.random.normal(k_xyz, (B, N, 3), jnp.float32)
    extfield = 0.05 * jax.random.normal(k_ext, (B, N, 3), jnp.float32)
    params = init_params(k_par)

    out = model_mlmm_forward(xyz, extfield, params)
    jax.block_until_ready(out)

    ref = ref_forward(xyz, extfield, params)
    for name in ("qm_energy", "qm_force", "qm_charge"):
        assert out[name].shape == ref[name].shape, name
        assert jnp.allclose(out[name], ref[name], rtol=1e-4, atol=1e-4), name

    print("KERNEL_OK")
</pallas_src>

<mosaic_0001>
module attributes {stable_mosaic.version = 11 : i64} {
  func.func @mlmm_kernel(%arg0: memref<16x8xf32, #tpu.memory_space<vmem>>, %arg1: memref<32x32xf32, #tpu.memory_space<vmem>>, %arg2: memref<16x8xf32, #tpu.memory_space<vmem>>) attributes {dimension_semantics = [], scalar_prefetch = 0 : i64, scratch_operands = 0 : i64, tpu.core_type = #tpu.core_type<tc>} {
    %c0 = arith.constant 0 : index
    %c0_0 = arith.constant 0 : index
    %0 = vector.load %arg0[%c0, %c0_0] : memref<16x8xf32, #tpu.memory_space<vmem>>, vector<16x8xf32>
    %c0_1 = arith.constant 0 : index
    %c0_2 = arith.constant 0 : index
    %1 = vector.load %arg1[%c0_1, %c0_2] : memref<32x32xf32, #tpu.memory_space<vmem>>, vector<8x32xf32>
    %cst = arith.constant dense<0.000000e+00> : vector<16x32xf32>
    %2 = tpu.matmul %0, %1, %cst {dimension_numbers = #tpu.dot_dimension_numbers<[1], [0], [0], [1], [0, 0, 1, 1], [], []>} : vector<16x8xf32>, vector<8x32xf32>, vector<16x32xf32> -> vector<16x32xf32>
    %cst_3 = arith.constant 0.000000e+00 : f32
    %3 = vector.broadcast %cst_3 : f32 to vector<16x32xf32>
    %4 = arith.maximumf %2, %3 : vector<16x32xf32>
    %5 = math.absf %2 : vector<16x32xf32>
    %cst_4 = arith.constant 0.000000e+00 : f32
    %6 = vector.broadcast %cst_4 : f32 to vector<16x32xf32>
    %7 = arith.subf %6, %5 : vector<16x32xf32>
    %8 = math.exp %7 : vector<16x32xf32>
    %cst_5 = arith.constant 1.000000e+00 : f32
    %9 = vector.broadcast %cst_5 : f32 to vector<16x32xf32>
    %10 = arith.addf %9, %8 : vector<16x32xf32>
    %11 = math.log %10 : vector<16x32xf32>
    %12 = arith.addf %4, %11 : vector<16x32xf32>
    %cst_6 = arith.constant 0.693147182 : f32
    %13 = vector.broadcast %cst_6 : f32 to vector<16x32xf32>
    %14 = arith.subf %12, %13 : vector<16x32xf32>
    %c24 = arith.constant 24 : index
    %c0_7 = arith.constant 0 : index
    %15 = vector.load %arg1[%c24, %c0_7] : memref<32x32xf32, #tpu.memory_space<vmem>>, vector<1x32xf32>
    %16 = vector.broadcast %15 : vector<1x32xf32> to vector<16x32xf32>
    %17 = arith.mulf %14, %16 : vector<16x32xf32>
    %18 = vector.extract_strided_slice %17 {offsets = [0, 0], sizes = [16, 16], strides = [1, 1]} : vector<16x32xf32> to vector<16x16xf32>
    %cst_8 = arith.constant dense<0.000000e+00> : vector<16xf32>
    %19 = vector.multi_reduction <add>, %18, %cst_8 [1] : vector<16x16xf32> to vector<16xf32>
    %20 = vector.shape_cast %19 : vector<16xf32> to vector<16x1xf32>
    %21 = vector.extract_strided_slice %17 {offsets = [0, 16], sizes = [16, 16], strides = [1, 1]} : vector<16x32xf32> to vector<16x16xf32>
    %cst_9 = arith.constant dense<0.000000e+00> : vector<16xf32>
    %22 = vector.multi_reduction <add>, %21, %cst_9 [1] : vector<16x16xf32> to vector<16xf32>
    %23 = vector.shape_cast %22 : vector<16xf32> to vector<16x1xf32>
    %24 = tpu.concatenate %20, %23 in 1 : vector<16x1xf32>, vector<16x1xf32> -> vector<16x2xf32>
    %c25 = arith.constant 25 : index
    %c0_10 = arith.constant 0 : index
    %25 = vector.load %arg1[%c25, %c0_10] : memref<32x32xf32, #tpu.memory_space<vmem>>, vector<1x1xf32>
    %26 = vector.extract_strided_slice %24 {offsets = [0, 0], sizes = [8, 2], strides = [1, 1]} : vector<16x2xf32> to vector<8x2xf32>
    %cst_11 = arith.constant dense<0.000000e+00> : vector<2xf32>
    %27 = vector.multi_reduction <add>, %26, %cst_11 [0] : vector<8x2xf32> to vector<2xf32>
    %28 = vector.shape_cast %27 : vector<2xf32> to vector<1x2xf32>
    %29 = vector.extract_strided_slice %28 {offsets = [0, 0], sizes = [1, 1], strides = [1, 1]} : vector<1x2xf32> to vector<1x1xf32>
    %30 = arith.addf %29, %25 : vector<1x1xf32>
    %31 = vector.extract_strided_slice %28 {offsets = [0, 1], sizes = [1, 1], strides = [1, 1]} : vector<1x2xf32> to vector<1x1xf32>
    %cst_12 = arith.constant -1.000000e+00 : f32
    %32 = vector.broadcast %cst_12 : f32 to vector<1x1xf32>
    %33 = arith.subf %32, %31 : vector<1x1xf32>
    %cst_13 = arith.constant 1.250000e-01 : f32
    %34 = vector.broadcast %cst_13 : f32 to vector<1x1xf32>
    %35 = arith.mulf %33, %34 : vector<1x1xf32>
    %36 = vector.extract_strided_slice %23 {offsets = [0, 0], sizes = [8, 1], strides = [1, 1]} : vector<16x1xf32> to vector<8x1xf32>
    %37 = vector.broadcast %35 : vector<1x1xf32> to vector<8x1xf32>
    %38 = arith.addf %36, %37 : vector<8x1xf32>
    %39 = vector.extract_strided_slice %24 {offsets = [8, 0], sizes = [8, 2], strides = [1, 1]} : vector<16x2xf32> to vector<8x2xf32>
    %cst_14 = arith.constant dense<0.000000e+00> : vector<2xf32>
    %40 = vector.multi_reduction <add>, %39, %cst_14 [0] : vector<8x2xf32> to vector<2xf32>
    %41 = vector.shape_cast %40 : vector<2xf32> to vector<1x2xf32>
    %42 = vector.extract_strided_slice %41 {offsets = [0, 0], sizes = [1, 1], strides = [1, 1]} : vector<1x2xf32> to vector<1x1xf32>
    %43 = arith.addf %42, %25 : vector<1x1xf32>
    %44 = vector.extract_strided_slice %41 {offsets = [0, 1], sizes = [1, 1], strides = [1, 1]} : vector<1x2xf32> to vector<1x1xf32>
    %cst_15 = arith.constant -1.000000e+00 : f32
    %45 = vector.broadcast %cst_15 : f32 to vector<1x1xf32>
    %46 = arith.subf %45, %44 : vector<1x1xf32>
    %cst_16 = arith.constant 1.250000e-01 : f32
    %47 = vector.broadcast %cst_16 : f32 to vector<1x1xf32>
    %48 = arith.mulf %46, %47 : vector<1x1xf32>
    %49 = vector.extract_strided_slice %23 {offsets = [8, 0], sizes = [8, 1], strides = [1, 1]} : vector<16x1xf32> to vector<8x1xf32>
    %50 = vector.broadcast %48 : vector<1x1xf32> to vector<8x1xf32>
    %51 = arith.addf %49, %50 : vector<8x1xf32>
    %52 = tpu.concatenate %30, %43 in 1 : vector<1x1xf32>, vector<1x1xf32> -> vector<1x2xf32>
    %53 = tpu.concatenate %38, %51 in 0 : vector<8x1xf32>, vector<8x1xf32> -> vector<16x1xf32>
    %54 = vector.extract_strided_slice %2 {offsets = [0, 0], sizes = [16, 16], strides = [1, 1]} : vector<16x32xf32> to vector<16x16xf32>
    %55 = arith.negf %54 : vector<16x16xf32>
    %56 = math.exp %55 : vector<16x16xf32>
    %cst_17 = arith.constant 1.000000e+00 : f32
    %57 = vector.broadcast %cst_17 : f32 to vector<16x16xf32>
    %58 = arith.addf %57, %56 : vector<16x16xf32>
    %59 = arith.divf %57, %58 : vector<16x16xf32>
    %60 = vector.extract_strided_slice %15 {offsets = [0, 0], sizes = [1, 16], strides = [1, 1]} : vector<1x32xf32> to vector<1x16xf32>
    %61 = vector.broadcast %60 : vector<1x16xf32> to vector<16x16xf32>
    %62 = arith.mulf %59, %61 : vector<16x16xf32>
    %c8 = arith.constant 8 : index
    %c0_18 = arith.constant 0 : index
    %63 = vector.load %arg1[%c8, %c0_18] : memref<32x32xf32, #tpu.memory_space<vmem>>, vector<16x3xf32>
    %cst_19 = arith.constant dense<0.000000e+00> : vector<16x3xf32>
    %64 = tpu.matmul %62, %63, %cst_19 {dimension_numbers = #tpu.dot_dimension_numbers<[1], [0], [0], [1], [0, 0, 1, 1], [], []>} : vector<16x16xf32>, vector<16x3xf32>, vector<16x3xf32> -> vector<16x3xf32>
    %cst_20 = arith.constant 0.000000e+00 : f32
    %65 = vector.broadcast %cst_20 : f32 to vector<16x3xf32>
    %66 = arith.subf %65, %64 : vector<16x3xf32>
    %67 = tpu.concatenate %53, %66 in 1 : vector<16x1xf32>, vector<16x3xf32> -> vector<16x4xf32>
    %c0_21 = arith.constant 0 : index
    %c0_22 = arith.constant 0 : index
    %68 = vector.load %arg2[%c0_21, %c0_22] : memref<16x8xf32, #tpu.memory_space<vmem>>, vector<16x4xf32>
    tpu.vector_store %arg2[%c0_21, %c0_22], %67 {strides = array<i32>} : memref<16x8xf32, #tpu.memory_space<vmem>>, vector<16x4xf32>,
    %c0_23 = arith.constant 0 : index
    %c4 = arith.constant 4 : index
    %69 = vector.load %arg2[%c0_23, %c4] : memref<16x8xf32, #tpu.memory_space<vmem>>, vector<1x2xf32>
    tpu.vector_store %arg2[%c0_23, %c4], %52 {strides = array<i32>} : memref<16x8xf32, #tpu.memory_space<vmem>>, vector<1x2xf32>,
    return
  }
}

</mosaic_0001>

<llo_original>
// kernel: squeeze.3
$region0: #{squeeze.3}
  %s0 = inlined_call_operand.vmem [shape: f32[16], index: 0, kind: input, shape index: {}]
  %s1 = inlined_call_operand.hbm [shape: f32[2,8], index: 1, kind: output, shape index: {}]
  $region1: #{squeeze.3} parent=0
    #allocation0 [shape = 'u8[1024]{0}', space=vmem, size = 0x400, scoped, tag = 'operand span for operand 1']
    #allocation1 [shape = 's32[1]{0}', space=sflag, size = 0x4, scoped, tag = 'scoped memory for squeeze.3']
    #allocation2 [shape = 'u8[4096]{0}', space=vmem, size = 0x1000, scoped, tag = 'scoped mem for output reshape']
    #allocation3 [shape = 'u8[4096]{0}', space=vmem, size = 0x1000, scoped, tag = 'scoped mem for input reshape']
    %2 = vsyncpa [#allocation1], 0
    %s4 = sshll.u32 1, 1
    %s5 = ssub.s32 %s4, 1
    %v6 = vld [vmem:[%s0] sm:%s5]
    %7 = vst [vmem:[#allocation3] sm:%s5] %v6
    %v8 = vld [vmem:[#allocation3] sm:$0x1]
    %vm9 = vcmask 64512
    %10 = vst.msk [vmem:[#allocation2] sm:$0x1] %vm9, %v8
    %v11 = vld [vmem:[#allocation3] sm:$0x1]
    %12 = vrot.lane.b32.xlu0 %v11, 120
    %v13 = vpop.permute.xlu0 %12
    %vm14 = vcmask 64512
    %s15 = scalar_lea.vmem [#allocation2], 1
    %16 = vst.msk [vmem:[%s15] sm:$0x1] %vm14, %v13
    %s18 = sshll.u32 1, 2
    %s19 = ssub.s32 %s18, 1
    %v21 = vld [vmem:[#allocation2] sm:%s19]
    %s22 = sshll.u32 1, 2
    %s23 = ssub.s32 %s22, 1
    %24 = vst [vmem:[#allocation0] sm:%s23] %v21
    %s26 = ssub.s32 32, 32
    %27 = vsyncadd [#allocation1], %s26
    %s29 = sshll.u32 [#allocation0], 4
    %s30 = int_to_ptr.vmem [resolvable:$true] %s29
    %32 = dma.vmem_to_hbm [thread:$0]  %s30, 32, %s1, [#allocation1]
    %33 = dma.done [#allocation1], 32
    %34 = vsyncpa [#allocation1], 1

// kernel: model_mlmm_forward.1
$region0: #{model_mlmm_forward.1}
  #allocation0 [shape = 'u32[]', space=smem, size = 0x4, offset = 0x4, fixed_abs, tag = 'smem constant byte address 0x4 - core index']
  #allocation1 [shape = 'u32[144,128]{1,0:T(1,128)}', space=vmem, size = 0x12000, scoped, tag = 'internal scratch']
  %s0 = inlined_call_operand.vmem [shape: f32[16,8], index: 0, kind: input, shape index: {}]
  %s1 = inlined_call_operand.vmem [shape: f32[32,32], index: 1, kind: input, shape index: {}]
  %s2 = inlined_call_operand.vmem [shape: f32[16,8], index: 2, kind: output, shape index: {}]
  %s3 = sld [smem:[#allocation0]]
  $region18: #{model_mlmm_forward.1} parent=0
    _
  %s5 = ssub.s32 1, %s3
  %s6 = scalar_select 0, %s5, %s3
  // Predicated region
  $region2: #{model_mlmm_forward.1} parent=0 // pred_check
    _
  $region3: #{model_mlmm_forward.1} parent=0 // pred_check_branch
    %8 = sbr.rel (0) target = $region5
  $region4: #{model_mlmm_forward.1} parent=0 // pred_region
    _
  $region5: #{model_mlmm_forward.1} parent=0 // pred_fallthru
    _
  // Predicated region
  $region6: #{model_mlmm_forward.1} parent=0 // pred_check
    _
  $region7: #{model_mlmm_forward.1} parent=0 // pred_check_branch
    %10 = sbr.rel (0) target = $region9
  $region8: #{model_mlmm_forward.1} parent=0 // pred_region
    _
  $region9: #{model_mlmm_forward.1} parent=0 // pred_fallthru
    _
  %v11 = vld [vmem:[%s0] sm:$0xff]
  %v12 = vld [vmem:[%s0 + $0x8] sm:$0xff]
  %v13 = vld [vmem:[%s1] sm:$0xff]
  %vm14 = vcmask 64512
  %v16 = vsel %vm14, %v11, 0
  %v19 = vsel %vm14, %v12, 0
  %21 = vmatprep.subr.mxu0 0.0
  %22 = vmatpush1.msra.mxu0 0.0
  %23 = vmatprep.subr.mxu0 0.0
  %24 = vmatpush1.msra.mxu0 0.0
  %25 = vmatprep.subr.mxu0 0.0
  %26 = vmatpush1.msra.mxu0 0.0
  %27 = vmatprep.subr.mxu0 0.0
  %28 = vmatpush1.msra.mxu0 0.0
  %29 = vmatprep.subr.mxu0 0.0
  %30 = vmatpush1.msra.mxu0 0.0
  %31 = vmatprep.subr.mxu0 0.0
  %32 = vmatpush1.msra.mxu0 0.0
  %33 = vmatprep.subr.mxu0 0.0
  %34 = vmatpush1.msra.mxu0 0.0
  %35 = vmatprep.subr.mxu0 0.0
  %36 = vmatpush1.msra.mxu0 0.0
  %37 = vmatprep.subr.mxu0 0.0
  %38 = vmatpush1.msra.mxu0 0.0
  %39 = vmatprep.subr.mxu0 0.0
  %40 = vmatpush1.msra.mxu0 0.0
  %41 = vmatprep.subr.mxu0 0.0
  %42 = vmatpush1.msra.mxu0 0.0
  %43 = vmatprep.subr.mxu0 0.0
  %44 = vmatpush1.msra.mxu0 0.0
  %45 = vmatprep.subr.mxu0 0.0
  %46 = vmatpush1.msra.mxu0 0.0
  %47 = vmatprep.subr.mxu0 0.0
  %48 = vmatpush1.msra.mxu0 0.0
  %49 = vmatprep.subr.mxu0 0.0
  %50 = vmatpush1.msra.mxu0 0.0
  %51 = vmatprep.subr.mxu0 0.0
  %52 = vmatpush1.msra.mxu0 %v13
  %53 = vmatprep.subr.mxu0 0.0
  %54 = vmatpush2.msra.mxu0 0.0
  %55 = vmatprep.subr.mxu0 0.0
  %56 = vmatpush2.msra.mxu0 0.0
  %57 = vmatprep.subr.mxu0 0.0
  %58 = vmatpush2.msra.mxu0 0.0
  %59 = vmatprep.subr.mxu0 0.0
  %60 = vmatpush2.msra.mxu0 0.0
  %61 = vmatprep.subr.mxu0 0.0
  %62 = vmatpush2.msra.mxu0 0.0
  %63 = vmatprep.subr.mxu0 0.0
  %64 = vmatpush2.msra.mxu0 0.0
  %65 = vmatprep.subr.mxu0 0.0
  %66 = vmatpush2.msra.mxu0 0.0
  %67 = vmatprep.subr.mxu0 0.0
  %68 = vmatpush2.msra.mxu0 0.0
  %69 = vmatprep.subr.mxu0 0.0
  %70 = vmatpush2.msra.mxu0 0.0
  %71 = vmatprep.subr.mxu0 0.0
  %72 = vmatpush2.msra.mxu0 0.0
  %73 = vmatprep.subr.mxu0 0.0
  %74 = vmatpush2.msra.mxu0 0.0
  %75 = vmatprep.subr.mxu0 0.0
  %76 = vmatpush2.msra.mxu0 0.0
  %77 = vmatprep.subr.mxu0 0.0
  %78 = vmatpush2.msra.mxu0 0.0
  %79 = vmatprep.subr.mxu0 0.0
  %80 = vmatpush2.msra.mxu0 0.0
  %81 = vmatprep.subr.mxu0 0.0
  %82 = vmatpush2.msra.mxu0 0.0
  %83 = vmatprep.subr.mxu0 0.0
  %84 = vmatpush2.msra.mxu0 0.0
  %85 = vmatprep.mubr.f32.mxu0 0.0
  %86 = vmatmul.mubr.f32.gmra.mxu0 %v16
  %v87 = vpop.f32.mrf.mxu0
  %v88 = vadd.f32 0.0, %v87
  %v89 = vpop.f32.mrf.mxu0
  %90 = vmatprep.mubr.f32.mxu0 0.0
  %91 = vmatmul.mubr.f32.gmra.mxu0 %v19
  %v92 = vpop.f32.mrf.mxu0
  %v93 = vadd.f32 0.0, %v92
  %v94 = vpop.f32.mrf.mxu0
  %95 = vdwg.mxu0
  %v96 = vmax.f32 %v88, 0.0
  %v97 = vmax.f32 %v93, 0.0
  %v98 = vand.u32 2147483647, %v88
  %v99 = vand.u32 2147483647, %v93
  %v100 = vsub.f32 0.0, %v98
  %v101 = vsub.f32 0.0, %v99
  %v102 = vmul.f32 %v100, 1.442695
  %v103 = vpow.pop %v102
  %v104 = vmul.f32 %v101, 1.442695
  %v105 = vpow.pop %v104
  %v106 = vadd.f32 %v103, 1.0
  %v107 = vadd.f32 %v105, 1.0
  %v108 = vlog2.pop %v106
  %v109 = vmul.f32 %v108, 0.6931472
  %v110 = vlog2.pop %v107
  %v111 = vmul.f32 %v110, 0.6931472
  %v112 = vadd.f32 %v96, %v109
  %v113 = vadd.f32 %v97, %v111
  %v114 = vsub.f32 %v112, 0.6931472
  %v115 = vsub.f32 %v113, 0.6931472
  %v116 = vld [vmem:[%s1 + $0x18] sm:$0x1]
  %v117 = vlaneseq
  %v118 = vshrl.u32 %v117, 7
  %v119 = vsub.s32 0, %v118
  %v120 = vrot.slane %v116, %v119
  %v121 = vmul.f32 %v114, %v120
  %v122 = vmul.f32 %v115, %v120
  %vm123 = vcmask 130048
  %v124 = vsel %vm123, %v121, 0.0
  %125 = vadd.xlane.f32.xlu0 %v124
  %v126 = vpop.xlane.xlu0 %125
  %v127 = vsel %vm123, %v122, 0.0
  %128 = vadd.xlane.f32.xlu0 %v127
  %v129 = vpop.xlane.xlu0 %128
  %132 = vrot.lane.b32.xlu0 %v121, 112
  %v133 = vpop.permute.xlu0 %132
  %134 = vrot.lane.b32.xlu0 %v122, 112
  %v135 = vpop.permute.xlu0 %134
  %v138 = vsel %vm123, %v133, 0.0
  %139 = vadd.xlane.f32.xlu0 %v138
  %v140 = vpop.xlane.xlu0 %139
  %v141 = vsel %vm123, %v135, 0.0
  %142 = vadd.xlane.f32.xlu0 %v141
  %v143 = vpop.xlane.xlu0 %142
  %vm144 = vcmask 7168
  %v145 = vsel %vm144, %v126, %v140
  %v146 = vsel %vm144, %v129, %v143
  %v147 = vld [vmem:[%s1 + $0x19] sm:$0x1]
  %vm148 = vcmask 15360
  %v149 = vsel %vm148, %v145, 0.0
  %v150 = vrot.slane %v149, 4
  %v151 = vadd.f32 %v149, %v150
  %v152 = vrot.slane %v151, 2
  %v153 = vadd.f32 %v151, %v152
  %v154 = vrot.slane %v153, 1
  %v155 = vadd.f32 %v153, %v154
  %v156 = vadd.f32 %v155, %v147
  %v157 = vsub.f32 -1.0, %v155
  %v158 = vmul.f32 %v157, 0.125
  %v159 = vadd.f32 %v140, %v158
  %v160 = vsel %vm148, %v146, 0.0
  %v161 = vrot.slane %v160, 4
  %v162 = vadd.f32 %v160, %v161
  %v163 = vrot.slane %v162, 2
  %v164 = vadd.f32 %v162, %v163
  %v165 = vrot.slane %v164, 1
  %v166 = vadd.f32 %v164, %v165
  %v167 = vadd.f32 %v166, %v147
  %v168 = vsub.f32 -1.0, %v166
  %v169 = vmul.f32 %v168, 0.125
  %v170 = vadd.f32 %v143, %v169
  %172 = vrot.lane.b32.xlu0 %v167, 1
  %v173 = vpop.permute.xlu0 %172
  %v175 = vsel %vm144, %v156, %v173
  %v176 = vxor.u32 %v88, 2147483648
  %v177 = vxor.u32 %v93, 2147483648
  %v178 = vmul.f32 %v176, 1.442695
  %v179 = vpow.pop %v178
  %v180 = vmul.f32 %v177, 1.442695
  %v181 = vpow.pop %v180
  %v182 = vadd.f32 %v179, 1.0
  %v183 = vadd.f32 %v181, 1.0
  %v184 = vrcp.pop %v182
  %v185 = vmul.f32 1.0, %v184
  %v186 = vrcp.pop %v183
  %v187 = vmul.f32 1.0, %v186
  %v188 = vmul.f32 %v185, %v120
  %v189 = vmul.f32 %v187, %v120
  %v190 = vld [vmem:[%s1 + $0x8] sm:$0xff]
  %v191 = vld [vmem:[%s1 + $0x10] sm:$0xff]
  %v193 = vsel %vm123, %v188, 0
  %v196 = vsel %vm123, %v189, 0
  %198 = vmatprep.subr.mxu0 0.0
  %199 = vmatpush1.msra.mxu0 0.0
  %200 = vmatprep.subr.mxu0 0.0
  %201 = vmatpush1.msra.mxu0 0.0
  %202 = vmatprep.subr.mxu0 0.0
  %203 = vmatpush1.msra.mxu0 0.0
  %204 = vmatprep.subr.mxu0 0.0
  %205 = vmatpush1.msra.mxu0 0.0
  %206 = vmatprep.subr.mxu0 0.0
  %207 = vmatpush1.msra.mxu0 0.0
  %208 = vmatprep.subr.mxu0 0.0
  %209 = vmatpush1.msra.mxu0 0.0
  %210 = vmatprep.subr.mxu0 0.0
  %211 = vmatpush1.msra.mxu0 0.0
  %212 = vmatprep.subr.mxu0 0.0
  %213 = vmatpush1.msra.mxu0 0.0
  %214 = vmatprep.subr.mxu0 0.0
  %215 = vmatpush1.msra.mxu0 0.0
  %216 = vmatprep.subr.mxu0 0.0
  %217 = vmatpush1.msra.mxu0 0.0
  %218 = vmatprep.subr.mxu0 0.0
  %219 = vmatpush1.msra.mxu0 0.0
  %220 = vmatprep.subr.mxu0 0.0
  %221 = vmatpush1.msra.mxu0 0.0
  %222 = vmatprep.subr.mxu0 0.0
  %223 = vmatpush1.msra.mxu0 0.0
  %224 = vmatprep.subr.mxu0 0.0
  %225 = vmatpush1.msra.mxu0 0.0
  %226 = vmatprep.subr.mxu0 0.0
  %227 = vmatpush1.msra.mxu0 %v191
  %228 = vmatprep.subr.mxu0 0.0
  %229 = vmatpush1.msra.mxu0 %v190
  %230 = vmatprep.subr.mxu0 0.0
  %231 = vmatpush2.msra.mxu0 0.0
  %232 = vmatprep.subr.mxu0 0.0
  %233 = vmatpush2.msra.mxu0 0.0
  %234 = vmatprep.subr.mxu0 0.0
  %235 = vmatpush2.msra.mxu0 0.0
  %236 = vmatprep.subr.mxu0 0.0
  %237 = vmatpush2.msra.mxu0 0.0
  %238 = vmatprep.subr.mxu0 0.0
  %239 = vmatpush2.msra.mxu0 0.0
  %240 = vmatprep.subr.mxu0 0.0
  %241 = vmatpush2.msra.mxu0 0.0
  %242 = vmatprep.subr.mxu0 0.0
  %243 = vmatpush2.msra.mxu0 0.0
  %244 = vmatprep.subr.mxu0 0.0
  %245 = vmatpush2.msra.mxu0 0.0
  %246 = vmatprep.subr.mxu0 0.0
  %247 = vmatpush2.msra.mxu0 0.0
  %248 = vmatprep.subr.mxu0 0.0
  %249 = vmatpush2.msra.mxu0 0.0
  %250 = vmatprep.subr.mxu0 0.0
  %251 = vmatpush2.msra.mxu0 0.0
  %252 = vmatprep.subr.mxu0 0.0
  %253 = vmatpush2.msra.mxu0 0.0
  %254 = vmatprep.subr.mxu0 0.0
  %255 = vmatpush2.msra.mxu0 0.0
  %256 = vmatprep.subr.mxu0 0.0
  %257 = vmatpush2.msra.mxu0 0.0
  %258 = vmatprep.subr.mxu0 0.0
  %259 = vmatpush2.msra.mxu0 0.0
  %260 = vmatprep.subr.mxu0 0.0
  %261 = vmatpush2.msra.mxu0 0.0
  %262 = vmatprep.mubr.f32.mxu0 0.0
  %263 = vmatmul.mubr.f32.gmra.mxu0 %v193
  %v264 = vpop.f32.mrf.mxu0
  %v265 = vadd.f32 0.0, %v264
  %v266 = vpop.f32.mrf.mxu0
  %267 = vmatprep.mubr.f32.mxu0 0.0
  %268 = vmatmul.mubr.f32.gmra.mxu0 %v196
  %v269 = vpop.f32.mrf.mxu0
  %v270 = vadd.f32 0.0, %v269
  %v271 = vpop.f32.mrf.mxu0
  %272 = vdwg.mxu0
  %v273 = vsub.f32 0.0, %v265
  %v274 = vsub.f32 0.0, %v270
  %277 = vrot.lane.b32.xlu0 %v159, 127
  %v278 = vpop.permute.xlu0 %277
  %279 = vrot.lane.b32.xlu0 %v170, 127
  %v280 = vpop.permute.xlu0 %279
  %285 = vrot.lane.b32.xlu0 %v273, 1
  %v286 = vpop.permute.xlu0 %285
  %287 = vrot.lane.b32.xlu0 %v274, 1
  %v288 = vpop.permute.xlu0 %287
  %v291 = vsel %vm144, %v278, %v286
  %v292 = vsel %vm144, %v280, %v288
  %vm293 = vcmask 31744
  %294 = vst.msk [vmem:[%s2] sm:$0xff] %vm293, %v291
  %295 = vst.msk [vmem:[%s2 + $0x8] sm:$0xff] %vm293, %v292
  %297 = vrot.lane.b32.xlu0 %v175, 4
  %v298 = vpop.permute.xlu0 %297
  %vm300 = vcmask 40992
  %301 = vst.msk [vmem:[%s2] sm:$0x1] %vm300, %v298
  // Predicated region
  $region10: #{model_mlmm_forward.1} parent=0 // pred_check
    _
  $region11: #{model_mlmm_forward.1} parent=0 // pred_check_branch
    %303 = sbr.rel (0) target = $region13
  $region12: #{model_mlmm_forward.1} parent=0 // pred_region
    _
  $region13: #{model_mlmm_forward.1} parent=0 // pred_fallthru
    _
  // Predicated region
  $region14: #{model_mlmm_forward.1} parent=0 // pred_check
    _
  $region15: #{model_mlmm_forward.1} parent=0 // pred_check_branch
    %305 = sbr.rel (0) target = $region17
  $region16: #{model_mlmm_forward.1} parent=0 // pred_region
    _
  $region17: #{model_mlmm_forward.1} parent=0 // pred_fallthru
    _

</llo_original>
